<compile_context>
chip_gen: v5e
topology: v5e:2x2
jax: 0.10.0
libtpu: 0.0.40
codegen_flags: <defaults>
</compile_context>

<pallas_src>
import functools

import jax
import jax.numpy as jnp
from jax import lax
from jax.experimental import pallas as pl
from jax.experimental.pallas import tpu as pltpu


def _round_up(n, m):
    return ((n + m - 1) // m) * m


def _pick_bm(batch, block_m):
    """Rows per grid step.

    Big tiles amortize the ~0.35us/step pipeline overhead; capped at 4096 so
    double-buffered f32 x tiles stay well inside v7x's 64 MiB VMEM; for large
    batches the tile is shrunk so the grid has at least two steps (work for
    both v7x TensorCores).  Always 8-row (sublane) aligned; 128-row aligned
    whenever the grid can have more than one step.
    """
    if batch <= 128:
        return _round_up(batch, 8)
    bm = max(128, (min(block_m, 4096) // 128) * 128)
    bm = min(bm, _round_up((batch + 1) // 2, 128))
    return bm


def _mlp_kernel(x_ref, w1_ref, b1_ref, w2_ref, b2_ref, o_ref):
    bm = x_ref.shape[0]
    d_out = w2_ref.shape[0]

    # Sub-chunk rows: bound vreg live ranges (h stays <= ~384 KiB) and let the
    # next chunk's MXU matmul overlap this chunk's VPU/XLU epilogue.
    if bm % 256 == 0:
        cm = 256
    elif bm % 128 == 0:
        cm = 128
    else:
        cm = bm
    n_chunks = bm // cm

    w1 = w1_ref[...]   # [d_in, d_hid] bf16, VMEM-resident (constant index_map)
    b1 = b1_ref[...]   # [1, d_hid]  f32
    w2 = w2_ref[...]   # [d_out, d_hid]
    b2 = b2_ref[...]   # [1, d_out] f32

    def chunk(c, carry):
        r0 = pl.multiple_of(c * cm, cm)
        # fc1 on the MXU: f32 x chunk cast to bf16 on-chip, f32 accumulation.
        xc = x_ref[pl.ds(r0, cm), :].astype(jnp.bfloat16)
        h = jnp.dot(xc, w1, preferred_element_type=jnp.float32)
        h = jnp.maximum(h + b1, 0.0)
        if d_out == 1:
            # Single-logit fc2: VPU multiply + XLU lane reduction in f32
            # (frees the MXU; f32 is required for v5e's VPU).
            out = jnp.sum(h * w2, axis=-1, keepdims=True)
        else:
            # General fallback: bf16 operands on the MXU, f32 accumulation.
            out = lax.dot_general(h.astype(w2.dtype), w2,
                                  (((1,), (1,)), ((), ())),
                                  preferred_element_type=jnp.float32)
        o_ref[pl.ds(r0, cm), :] = (out + b2).astype(o_ref.dtype)
        return carry

    lax.fori_loop(0, n_chunks, chunk, 0, unroll=True)


@functools.partial(jax.jit, static_argnames=("block_m",))
def universal_fake_detect_v2(x, w1, b1, w2, b2, *, block_m=1024):
    """Forward pass of UniversalFakeDetectv2 with PyTorch-layout parameters.

    Args:
      x:  [B, D_in]        float32 activations.
      w1: [D_hid, D_in]    fc1.weight,  b1: [D_hid]  fc1.bias.
      w2: [D_out, D_hid]   fc2.weight,  b2: [D_out]  fc2.bias.
      block_m: target rows per grid step.
    Returns:
      [B, D_out] float32.
    """
    batch, d_in = x.shape
    d_hid = w1.shape[0]
    d_out = w2.shape[0]

    bm = _pick_bm(batch, block_m)
    grid_m = pl.cdiv(batch, bm)

    # Layout glue (weights only; x is passed through untouched as f32 and is
    # cast to bf16 on-chip inside the kernel).
    w1_t = w1.T.astype(jnp.bfloat16)                  # [D_in, D_hid]
    b1_r = b1.reshape(1, d_hid).astype(jnp.float32)   # [1, D_hid]
    w2_r = w2.astype(jnp.float32 if d_out == 1 else jnp.bfloat16)
    b2_r = b2.reshape(1, d_out).astype(jnp.float32)   # [1, D_out]

    return pl.pallas_call(
        _mlp_kernel,
        out_shape=jax.ShapeDtypeStruct((batch, d_out), jnp.float32),
        grid_spec=pltpu.PrefetchScalarGridSpec(
            num_scalar_prefetch=0,
            grid=(grid_m,),
            in_specs=[
                pl.BlockSpec((bm, d_in), lambda i: (i, 0)),      # x (streamed; ragged last block OK)
                pl.BlockSpec((d_in, d_hid), lambda i: (0, 0)),   # w1 (resident)
                pl.BlockSpec((1, d_hid), lambda i: (0, 0)),      # b1
                pl.BlockSpec((d_out, d_hid), lambda i: (0, 0)),  # w2
                pl.BlockSpec((1, d_out), lambda i: (0, 0)),      # b2
            ],
            out_specs=pl.BlockSpec((bm, d_out), lambda i: (i, 0)),
        ),
        compiler_params=pltpu.CompilerParams(
            # M tiles are independent -> shard across v7x's two TensorCores.
            dimension_semantics=("parallel",),
        ),
        # NOTE: at the default block_m=1024 total VMEM use is ~8 MiB (f32 x
        # double-buffer 6 MiB + bf16 w1 + temps), under every chip's default
        # scoped limit; raising block_m past ~2048 on v5e would additionally
        # need vmem_limit_bytes.
    )(x, w1_t, b1_r, w2_r, b2_r)


if __name__ == "__main__":
    # Module-default dims: Linear 768 -> 384 -> 1.
    input_dim, hidden_dim, num_classes = 768, 384, 1

    key = jax.random.PRNGKey(0)
    kx, k1, k2, k3, k4 = jax.random.split(key, 5)
    w1 = jax.random.normal(k1, (hidden_dim, input_dim), jnp.float32) * 0.02
    b1 = jax.random.normal(k2, (hidden_dim,), jnp.float32) * 0.02
    w2 = jax.random.normal(k3, (num_classes, hidden_dim), jnp.float32) * 0.02
    b2 = jax.random.normal(k4, (num_classes,), jnp.float32) * 0.02

    def reference(x):
        # Same bf16 rounding of the fc1 operands as the kernel; f32 elsewhere.
        xb = x.astype(jnp.bfloat16).astype(jnp.float32)
        w1b = w1.astype(jnp.bfloat16).astype(jnp.float32)
        h = jnp.maximum(
            jnp.dot(xb, w1b.T, precision="highest") + b1[None, :], 0.0)
        return jnp.dot(h, w2.T, precision="highest") + b2[None, :]

    # batch=16: single aligned tile (grid=1).  batch=300: ragged batch ->
    # cdiv grid with two 256-row tiles, no padding pass over x.
    for batch in (16, 300):
        x = jax.random.normal(jax.random.fold_in(kx, batch),
                              (batch, input_dim), jnp.float32)
        out = jax.block_until_ready(universal_fake_detect_v2(x, w1, b1, w2, b2))
        ref = reference(x)
        assert out.shape == (batch, num_classes), out.shape
        err = float(jnp.max(jnp.abs(out - ref)))
        assert jnp.allclose(out, ref, atol=1e-3, rtol=1e-3), err

    print("KERNEL_OK")
</pallas_src>

<mosaic_0001>
module attributes {stable_mosaic.version = 11 : i64} {
  func.func @_mlp_kernel(%arg0: i32, %arg1: memref<16x768xf32, #tpu.memory_space<vmem>>, %arg2: memref<768x384xbf16, #tpu.memory_space<vmem>>, %arg3: memref<1x384xf32, #tpu.memory_space<vmem>>, %arg4: memref<1x384xf32, #tpu.memory_space<vmem>>, %arg5: memref<1x1xf32, #tpu.memory_space<vmem>>, %arg6: memref<16x1xf32, #tpu.memory_space<vmem>>) attributes {dimension_semantics = [#tpu.dimension_semantics<parallel>], iteration_bounds = array<i64: 1>, scalar_prefetch = 0 : i64, scratch_operands = 0 : i64, tpu.core_type = #tpu.core_type<tc>, window_params = [{transform_indices = @transform_0, window_bounds = array<i64: 16, 768>}, {pipeline_mode = #tpu.pipeline_mode<synchronous>, transform_indices = @transform_1, window_bounds = array<i64: 768, 384>}, {pipeline_mode = #tpu.pipeline_mode<synchronous>, transform_indices = @transform_2, window_bounds = array<i64: 1, 384>}, {pipeline_mode = #tpu.pipeline_mode<synchronous>, transform_indices = @transform_3, window_bounds = array<i64: 1, 384>}, {pipeline_mode = #tpu.pipeline_mode<synchronous>, transform_indices = @transform_4, window_bounds = array<i64: 1, 1>}, {transform_indices = @transform_5, window_bounds = array<i64: 16, 1>}]} {
    %c0 = arith.constant 0 : index
    %c0_0 = arith.constant 0 : index
    %0 = vector.load %arg2[%c0, %c0_0] : memref<768x384xbf16, #tpu.memory_space<vmem>>, vector<768x384xbf16>
    %c0_1 = arith.constant 0 : index
    %c0_2 = arith.constant 0 : index
    %1 = vector.load %arg3[%c0_1, %c0_2] : memref<1x384xf32, #tpu.memory_space<vmem>>, vector<1x384xf32>
    %c0_3 = arith.constant 0 : index
    %c0_4 = arith.constant 0 : index
    %2 = vector.load %arg4[%c0_3, %c0_4] : memref<1x384xf32, #tpu.memory_space<vmem>>, vector<1x384xf32>
    %c0_5 = arith.constant 0 : index
    %c0_6 = arith.constant 0 : index
    %3 = vector.load %arg5[%c0_5, %c0_6] : memref<1x1xf32, #tpu.memory_space<vmem>>, vector<1x1xf32>
    %c0_i32 = arith.constant 0 : i32
    %c16_i32 = arith.constant 16 : i32
    %4 = arith.muli %c0_i32, %c16_i32 : i32
    %5 = tpu.assume_multiple %4, 16 : i32
    %6 = arith.index_cast %5 : i32 to index
    %c0_7 = arith.constant 0 : index
    %7 = vector.load %arg1[%6, %c0_7] : memref<16x768xf32, #tpu.memory_space<vmem>>, vector<16x768xf32>
    %8 = arith.truncf %7 : vector<16x768xf32> to vector<16x768xbf16>
    %cst = arith.constant dense<0.000000e+00> : vector<16x384xf32>
    %9 = tpu.matmul %8, %0, %cst {dimension_numbers = #tpu.dot_dimension_numbers<[1], [0], [0], [1], [0, 0, 1, 1], [], []>} : vector<16x768xbf16>, vector<768x384xbf16>, vector<16x384xf32> -> vector<16x384xf32>
    %10 = vector.broadcast %1 : vector<1x384xf32> to vector<16x384xf32>
    %11 = arith.addf %9, %10 : vector<16x384xf32>
    %cst_8 = arith.constant 0.000000e+00 : f32
    %12 = vector.broadcast %cst_8 : f32 to vector<16x384xf32>
    %13 = arith.maximumf %11, %12 : vector<16x384xf32>
    %14 = vector.broadcast %2 : vector<1x384xf32> to vector<16x384xf32>
    %15 = arith.mulf %13, %14 : vector<16x384xf32>
    %cst_9 = arith.constant dense<0.000000e+00> : vector<16xf32>
    %16 = vector.multi_reduction <add>, %15, %cst_9 [1] : vector<16x384xf32> to vector<16xf32>
    %17 = vector.shape_cast %16 : vector<16xf32> to vector<16x1xf32>
    %18 = vector.broadcast %3 : vector<1x1xf32> to vector<16x1xf32>
    %19 = arith.addf %17, %18 : vector<16x1xf32>
    %20 = arith.index_cast %5 : i32 to index
    %c0_10 = arith.constant 0 : index
    %21 = vector.load %arg6[%20, %c0_10] : memref<16x1xf32, #tpu.memory_space<vmem>>, vector<16x1xf32>
    tpu.vector_store %arg6[%20, %c0_10], %19 {strides = array<i32>} : memref<16x1xf32, #tpu.memory_space<vmem>>, vector<16x1xf32>,
    %c1_i32 = arith.constant 1 : i32
    return
  }
  func.func @transform_0(%arg0: i32) -> (i32, i32) {
    %c0_i32 = arith.constant 0 : i32
    %c0_i32_0 = arith.constant 0 : i32
    return %arg0, %c0_i32 : i32, i32
  }
  func.func @transform_1(%arg0: i32) -> (i32, i32) {
    %c0_i32 = arith.constant 0 : i32
    %c0_i32_0 = arith.constant 0 : i32
    %c0_i32_1 = arith.constant 0 : i32
    return %c0_i32, %c0_i32_0 : i32, i32
  }
  func.func @transform_2(%arg0: i32) -> (i32, i32) {
    %c0_i32 = arith.constant 0 : i32
    %c0_i32_0 = arith.constant 0 : i32
    %c0_i32_1 = arith.constant 0 : i32
    return %c0_i32, %c0_i32_0 : i32, i32
  }
  func.func @transform_3(%arg0: i32) -> (i32, i32) {
    %c0_i32 = arith.constant 0 : i32
    %c0_i32_0 = arith.constant 0 : i32
    %c0_i32_1 = arith.constant 0 : i32
    return %c0_i32, %c0_i32_0 : i32, i32
  }
  func.func @transform_4(%arg0: i32) -> (i32, i32) {
    %c0_i32 = arith.constant 0 : i32
    %c0_i32_0 = arith.constant 0 : i32
    %c0_i32_1 = arith.constant 0 : i32
    return %c0_i32, %c0_i32_0 : i32, i32
  }
  func.func @transform_5(%arg0: i32) -> (i32, i32) {
    %c0_i32 = arith.constant 0 : i32
    %c0_i32_0 = arith.constant 0 : i32
    return %arg0, %c0_i32 : i32, i32
  }
}

</mosaic_0001>

<llo_original>
// kernel: universal_fake_detect_v2.1
$region0: #{universal_fake_detect_v2.1}
  #allocation0 [shape = 'u32[]', space=smem, size = 0x4, offset = 0x4, fixed_abs, tag = 'smem constant byte address 0x4 - core index']
  #allocation1 [shape = 'u32[72,128]{1,0:T(1,128)}', space=vmem, size = 0x9000, scoped, tag = 'internal scratch']
  #allocation2 [shape = 'f32[1,1]{1,0:T(1,128)S(1)}', space=vmem, size = 0x200, scoped, tag = 'scoped memory for universal_fake_detect_v2.1']
  %s0 = inlined_call_operand.vmem [shape: f32[16,768], index: 0, kind: input, shape index: {}]
  %s1 = inlined_call_operand.vmem [shape: bf16[768,384], index: 1, kind: input, shape index: {}]
  %s2 = inlined_call_operand.vmem [shape: f32[1,384], index: 2, kind: input, shape index: {}]
  %s3 = inlined_call_operand.vmem [shape: f32[1,384], index: 3, kind: input, shape index: {}]
  %s4 = inlined_call_operand.<no memory space> [shape: f32[1,1], index: 4, kind: input, shape index: {}]
  %s5 = inlined_call_operand.vmem [shape: f32[16,1], index: 5, kind: output, shape index: {}]
  %s6 = sld [smem:[#allocation0]]
  $region30: #{universal_fake_detect_v2.1} parent=0
    _
  %s8 = ssub.s32 1, %s6
  %s9 = scalar_select 0, %s8, %s6
  %v10 = vstv %s4
  %11 = vst [vmem:[#allocation2] sm:$0x1] %v10
  // Predicated region
  $region2: #{universal_fake_detect_v2.1} parent=0 // pred_check
    _
  $region3: #{universal_fake_detect_v2.1} parent=0 // pred_check_branch
    %13 = sbr.rel (0) target = $region5
  $region4: #{universal_fake_detect_v2.1} parent=0 // pred_region
    _
  $region5: #{universal_fake_detect_v2.1} parent=0 // pred_fallthru
    _
  // Predicated region
  $region6: #{universal_fake_detect_v2.1} parent=0 // pred_check
    _
  $region7: #{universal_fake_detect_v2.1} parent=0 // pred_check_branch
    %15 = sbr.rel (0) target = $region9
  $region8: #{universal_fake_detect_v2.1} parent=0 // pred_region
    _
  $region9: #{universal_fake_detect_v2.1} parent=0 // pred_fallthru
    _
  // Predicated region
  $region10: #{universal_fake_detect_v2.1} parent=0 // pred_check
    _
  $region11: #{universal_fake_detect_v2.1} parent=0 // pred_check_branch
    %17 = sbr.rel (0) target = $region13
  $region12: #{universal_fake_detect_v2.1} parent=0 // pred_region
    _
  $region13: #{universal_fake_detect_v2.1} parent=0 // pred_fallthru
    _
  // Predicated region
  $region14: #{universal_fake_detect_v2.1} parent=0 // pred_check
    _
  $region15: #{universal_fake_detect_v2.1} parent=0 // pred_check_branch
    %19 = sbr.rel (0) target = $region17
  $region16: #{universal_fake_detect_v2.1} parent=0 // pred_region
    _
  $region17: #{universal_fake_detect_v2.1} parent=0 // pred_fallthru
    _
  // Predicated region
  $region18: #{universal_fake_detect_v2.1} parent=0 // pred_check
    _
  $region19: #{universal_fake_detect_v2.1} parent=0 // pred_check_branch
    %21 = sbr.rel (0) target = $region21
  $region20: #{universal_fake_detect_v2.1} parent=0 // pred_region
    _
  $region21: #{universal_fake_detect_v2.1} parent=0 // pred_fallthru
    _
  %v22 = vld [vmem:[%s1] sm:$0xff]
  %v23 = vld [vmem:[%s1 + $0x8] sm:$0xf]
  %v24 = vld [vmem:[%s1 + $0xc] sm:$0xff]
  %v25 = vld [vmem:[%s1 + $0x14] sm:$0xf]
  %v26 = vld [vmem:[%s1 + $0x18] sm:$0xff]
  %v27 = vld [vmem:[%s1 + $0x20] sm:$0xf]
  %v28 = vld [vmem:[%s1 + $0x24] sm:$0xff]
  %v29 = vld [vmem:[%s1 + $0x2c] sm:$0xf]
  %v30 = vld [vmem:[%s1 + $0x30] sm:$0xff]
  %v31 = vld [vmem:[%s1 + $0x38] sm:$0xf]
  %v32 = vld [vmem:[%s1 + $0x3c] sm:$0xff]
  %v33 = vld [vmem:[%s1 + $0x44] sm:$0xf]
  %v34 = vld [vmem:[%s1 + $0x48] sm:$0xff]
  %v35 = vld [vmem:[%s1 + $0x50] sm:$0xf]
  %v36 = vld [vmem:[%s1 + $0x54] sm:$0xff]
  %v37 = vld [vmem:[%s1 + $0x5c] sm:$0xf]
  %v38 = vld [vmem:[%s1 + $0x60] sm:$0xff]
  %v39 = vld [vmem:[%s1 + $0x68] sm:$0xf]
  %v40 = vld [vmem:[%s1 + $0x6c] sm:$0xff]
  %v41 = vld [vmem:[%s1 + $0x74] sm:$0xf]
  %v42 = vld [vmem:[%s1 + $0x78] sm:$0xff]
  %v43 = vld [vmem:[%s1 + $0x80] sm:$0xf]
  %v44 = vld [vmem:[%s1 + $0x84] sm:$0xff]
  %v45 = vld [vmem:[%s1 + $0x8c] sm:$0xf]
  %v46 = vld [vmem:[%s1 + $0x90] sm:$0xff]
  %v47 = vld [vmem:[%s1 + $0x98] sm:$0xf]
  %v48 = vld [vmem:[%s1 + $0x9c] sm:$0xff]
  %v49 = vld [vmem:[%s1 + $0xa4] sm:$0xf]
  %v50 = vld [vmem:[%s1 + $0xa8] sm:$0xff]
  %v51 = vld [vmem:[%s1 + $0xb0] sm:$0xf]
  %v52 = vld [vmem:[%s1 + $0xb4] sm:$0xff]
  %v53 = vld [vmem:[%s1 + $0xbc] sm:$0xf]
  %v54 = vld [vmem:[%s1 + $0xc0] sm:$0xff]
  %v55 = vld [vmem:[%s1 + $0xc8] sm:$0xf]
  %v56 = vld [vmem:[%s1 + $0xcc] sm:$0xff]
  %v57 = vld [vmem:[%s1 + $0xd4] sm:$0xf]
  %v58 = vld [vmem:[%s1 + $0xd8] sm:$0xff]
  %v59 = vld [vmem:[%s1 + $0xe0] sm:$0xf]
  %v60 = vld [vmem:[%s1 + $0xe4] sm:$0xff]
  %v61 = vld [vmem:[%s1 + $0xec] sm:$0xf]
  %v62 = vld [vmem:[%s1 + $0xf0] sm:$0xff]
  %v63 = vld [vmem:[%s1 + $0xf8] sm:$0xf]
  %v64 = vld [vmem:[%s1 + $0xfc] sm:$0xff]
  %v65 = vld [vmem:[%s1 + $0x104] sm:$0xf]
  %v66 = vld [vmem:[%s1 + $0x108] sm:$0xff]
  %v67 = vld [vmem:[%s1 + $0x110] sm:$0xf]
  %v68 = vld [vmem:[%s1 + $0x114] sm:$0xff]
  %v69 = vld [vmem:[%s1 + $0x11c] sm:$0xf]
  %v70 = vld [vmem:[%s1 + $0x120] sm:$0xff]
  %v71 = vld [vmem:[%s1 + $0x128] sm:$0xf]
  %v72 = vld [vmem:[%s1 + $0x12c] sm:$0xff]
  %v73 = vld [vmem:[%s1 + $0x134] sm:$0xf]
  %v74 = vld [vmem:[%s1 + $0x138] sm:$0xff]
  %v75 = vld [vmem:[%s1 + $0x140] sm:$0xf]
  %v76 = vld [vmem:[%s1 + $0x144] sm:$0xff]
  %v77 = vld [vmem:[%s1 + $0x14c] sm:$0xf]
  %v78 = vld [vmem:[%s1 + $0x150] sm:$0xff]
  %v79 = vld [vmem:[%s1 + $0x158] sm:$0xf]
  %v80 = vld [vmem:[%s1 + $0x15c] sm:$0xff]
  %v81 = vld [vmem:[%s1 + $0x164] sm:$0xf]
  %v82 = vld [vmem:[%s1 + $0x168] sm:$0xff]
  %v83 = vld [vmem:[%s1 + $0x170] sm:$0xf]
  %v84 = vld [vmem:[%s1 + $0x174] sm:$0xff]
  %v85 = vld [vmem:[%s1 + $0x17c] sm:$0xf]
  %v86 = vld [vmem:[%s1 + $0x180] sm:$0xff]
  %v87 = vld [vmem:[%s1 + $0x188] sm:$0xf]
  %v88 = vld [vmem:[%s1 + $0x18c] sm:$0xff]
  %v89 = vld [vmem:[%s1 + $0x194] sm:$0xf]
  %v90 = vld [vmem:[%s1 + $0x198] sm:$0xff]
  %v91 = vld [vmem:[%s1 + $0x1a0] sm:$0xf]
  %v92 = vld [vmem:[%s1 + $0x1a4] sm:$0xff]
  %v93 = vld [vmem:[%s1 + $0x1ac] sm:$0xf]
  %v94 = vld [vmem:[%s1 + $0x1b0] sm:$0xff]
  %v95 = vld [vmem:[%s1 + $0x1b8] sm:$0xf]
  %v96 = vld [vmem:[%s1 + $0x1bc] sm:$0xff]
  %v97 = vld [vmem:[%s1 + $0x1c4] sm:$0xf]
  %v98 = vld [vmem:[%s1 + $0x1c8] sm:$0xff]
  %v99 = vld [vmem:[%s1 + $0x1d0] sm:$0xf]
  %v100 = vld [vmem:[%s1 + $0x1d4] sm:$0xff]
  %v101 = vld [vmem:[%s1 + $0x1dc] sm:$0xf]
  %v102 = vld [vmem:[%s1 + $0x1e0] sm:$0xff]
  %v103 = vld [vmem:[%s1 + $0x1e8] sm:$0xf]
  %v104 = vld [vmem:[%s1 + $0x1ec] sm:$0xff]
  %v105 = vld [vmem:[%s1 + $0x1f4] sm:$0xf]
  %v106 = vld [vmem:[%s1 + $0x1f8] sm:$0xff]
  %v107 = vld [vmem:[%s1 + $0x200] sm:$0xf]
  %v108 = vld [vmem:[%s1 + $0x204] sm:$0xff]
  %v109 = vld [vmem:[%s1 + $0x20c] sm:$0xf]
  %v110 = vld [vmem:[%s1 + $0x210] sm:$0xff]
  %v111 = vld [vmem:[%s1 + $0x218] sm:$0xf]
  %v112 = vld [vmem:[%s1 + $0x21c] sm:$0xff]
  %v113 = vld [vmem:[%s1 + $0x224] sm:$0xf]
  %v114 = vld [vmem:[%s1 + $0x228] sm:$0xff]
  %v115 = vld [vmem:[%s1 + $0x230] sm:$0xf]
  %v116 = vld [vmem:[%s1 + $0x234] sm:$0xff]
  %v117 = vld [vmem:[%s1 + $0x23c] sm:$0xf]
  %v118 = vld [vmem:[%s1 + $0x240] sm:$0xff]
  %v119 = vld [vmem:[%s1 + $0x248] sm:$0xf]
  %v120 = vld [vmem:[%s1 + $0x24c] sm:$0xff]
  %v121 = vld [vmem:[%s1 + $0x254] sm:$0xf]
  %v122 = vld [vmem:[%s1 + $0x258] sm:$0xff]
  %v123 = vld [vmem:[%s1 + $0x260] sm:$0xf]
  %v124 = vld [vmem:[%s1 + $0x264] sm:$0xff]
  %v125 = vld [vmem:[%s1 + $0x26c] sm:$0xf]
  %v126 = vld [vmem:[%s1 + $0x270] sm:$0xff]
  %v127 = vld [vmem:[%s1 + $0x278] sm:$0xf]
  %v128 = vld [vmem:[%s1 + $0x27c] sm:$0xff]
  %v129 = vld [vmem:[%s1 + $0x284] sm:$0xf]
  %v130 = vld [vmem:[%s1 + $0x288] sm:$0xff]
  %v131 = vld [vmem:[%s1 + $0x290] sm:$0xf]
  %v132 = vld [vmem:[%s1 + $0x294] sm:$0xff]
  %v133 = vld [vmem:[%s1 + $0x29c] sm:$0xf]
  %v134 = vld [vmem:[%s1 + $0x2a0] sm:$0xff]
  %v135 = vld [vmem:[%s1 + $0x2a8] sm:$0xf]
  %v136 = vld [vmem:[%s1 + $0x2ac] sm:$0xff]
  %v137 = vld [vmem:[%s1 + $0x2b4] sm:$0xf]
  %v138 = vld [vmem:[%s1 + $0x2b8] sm:$0xff]
  %v139 = vld [vmem:[%s1 + $0x2c0] sm:$0xf]
  %v140 = vld [vmem:[%s1 + $0x2c4] sm:$0xff]
  %v141 = vld [vmem:[%s1 + $0x2cc] sm:$0xf]
  %v142 = vld [vmem:[%s1 + $0x2d0] sm:$0xff]
  %v143 = vld [vmem:[%s1 + $0x2d8] sm:$0xf]
  %v144 = vld [vmem:[%s1 + $0x2dc] sm:$0xff]
  %v145 = vld [vmem:[%s1 + $0x2e4] sm:$0xf]
  %v146 = vld [vmem:[%s1 + $0x2e8] sm:$0xff]
  %v147 = vld [vmem:[%s1 + $0x2f0] sm:$0xf]
  %v148 = vld [vmem:[%s1 + $0x2f4] sm:$0xff]
  %v149 = vld [vmem:[%s1 + $0x2fc] sm:$0xf]
  %v150 = vld [vmem:[%s1 + $0x300] sm:$0xff]
  %v151 = vld [vmem:[%s1 + $0x308] sm:$0xf]
  %v152 = vld [vmem:[%s1 + $0x30c] sm:$0xff]
  %v153 = vld [vmem:[%s1 + $0x314] sm:$0xf]
  %v154 = vld [vmem:[%s1 + $0x318] sm:$0xff]
  %v155 = vld [vmem:[%s1 + $0x320] sm:$0xf]
  %v156 = vld [vmem:[%s1 + $0x324] sm:$0xff]
  %v157 = vld [vmem:[%s1 + $0x32c] sm:$0xf]
  %v158 = vld [vmem:[%s1 + $0x330] sm:$0xff]
  %v159 = vld [vmem:[%s1 + $0x338] sm:$0xf]
  %v160 = vld [vmem:[%s1 + $0x33c] sm:$0xff]
  %v161 = vld [vmem:[%s1 + $0x344] sm:$0xf]
  %v162 = vld [vmem:[%s1 + $0x348] sm:$0xff]
  %v163 = vld [vmem:[%s1 + $0x350] sm:$0xf]
  %v164 = vld [vmem:[%s1 + $0x354] sm:$0xff]
  %v165 = vld [vmem:[%s1 + $0x35c] sm:$0xf]
  %v166 = vld [vmem:[%s1 + $0x360] sm:$0xff]
  %v167 = vld [vmem:[%s1 + $0x368] sm:$0xf]
  %v168 = vld [vmem:[%s1 + $0x36c] sm:$0xff]
  %v169 = vld [vmem:[%s1 + $0x374] sm:$0xf]
  %v170 = vld [vmem:[%s1 + $0x378] sm:$0xff]
  %v171 = vld [vmem:[%s1 + $0x380] sm:$0xf]
  %v172 = vld [vmem:[%s1 + $0x384] sm:$0xff]
  %v173 = vld [vmem:[%s1 + $0x38c] sm:$0xf]
  %v174 = vld [vmem:[%s1 + $0x390] sm:$0xff]
  %v175 = vld [vmem:[%s1 + $0x398] sm:$0xf]
  %v176 = vld [vmem:[%s1 + $0x39c] sm:$0xff]
  %v177 = vld [vmem:[%s1 + $0x3a4] sm:$0xf]
  %v178 = vld [vmem:[%s1 + $0x3a8] sm:$0xff]
  %v179 = vld [vmem:[%s1 + $0x3b0] sm:$0xf]
  %v180 = vld [vmem:[%s1 + $0x3b4] sm:$0xff]
  %v181 = vld [vmem:[%s1 + $0x3bc] sm:$0xf]
  %v182 = vld [vmem:[%s1 + $0x3c0] sm:$0xff]
  %v183 = vld [vmem:[%s1 + $0x3c8] sm:$0xf]
  %v184 = vld [vmem:[%s1 + $0x3cc] sm:$0xff]
  %v185 = vld [vmem:[%s1 + $0x3d4] sm:$0xf]
  %v186 = vld [vmem:[%s1 + $0x3d8] sm:$0xff]
  %v187 = vld [vmem:[%s1 + $0x3e0] sm:$0xf]
  %v188 = vld [vmem:[%s1 + $0x3e4] sm:$0xff]
  %v189 = vld [vmem:[%s1 + $0x3ec] sm:$0xf]
  %v190 = vld [vmem:[%s1 + $0x3f0] sm:$0xff]
  %v191 = vld [vmem:[%s1 + $0x3f8] sm:$0xf]
  %v192 = vld [vmem:[%s1 + $0x3fc] sm:$0xff]
  %v193 = vld [vmem:[%s1 + $0x404] sm:$0xf]
  %v194 = vld [vmem:[%s1 + $0x408] sm:$0xff]
  %v195 = vld [vmem:[%s1 + $0x410] sm:$0xf]
  %v196 = vld [vmem:[%s1 + $0x414] sm:$0xff]
  %v197 = vld [vmem:[%s1 + $0x41c] sm:$0xf]
  %v198 = vld [vmem:[%s1 + $0x420] sm:$0xff]
  %v199 = vld [vmem:[%s1 + $0x428] sm:$0xf]
  %v200 = vld [vmem:[%s1 + $0x42c] sm:$0xff]
  %v201 = vld [vmem:[%s1 + $0x434] sm:$0xf]
  %v202 = vld [vmem:[%s1 + $0x438] sm:$0xff]
  %v203 = vld [vmem:[%s1 + $0x440] sm:$0xf]
  %v204 = vld [vmem:[%s1 + $0x444] sm:$0xff]
  %v205 = vld [vmem:[%s1 + $0x44c] sm:$0xf]
  %v206 = vld [vmem:[%s1 + $0x450] sm:$0xff]
  %v207 = vld [vmem:[%s1 + $0x458] sm:$0xf]
  %v208 = vld [vmem:[%s1 + $0x45c] sm:$0xff]
  %v209 = vld [vmem:[%s1 + $0x464] sm:$0xf]
  %v210 = vld [vmem:[%s1 + $0x468] sm:$0xff]
  %v211 = vld [vmem:[%s1 + $0x470] sm:$0xf]
  %v212 = vld [vmem:[%s1 + $0x474] sm:$0xff]
  %v213 = vld [vmem:[%s1 + $0x47c] sm:$0xf]
  %v214 = vld [vmem:[%s2] sm:$0x7]
  %v215 = vld [vmem:[%s3] sm:$0x7]
  %v216 = vld [vmem:[#allocation2] sm:$0x1]
  %s217 = smul.u32 0, 6
  %s218 = smul.addr %s217, 8
  %s219 = scalar_lea.vmem %s0, %s218
  %v220 = vld [vmem:[%s219] sm:$0xff]
  %v221 = vld [vmem:[%s219 + $0x8] sm:$0xff]
  %v222 = vld [vmem:[%s219 + $0x10] sm:$0xff]
  %v223 = vld [vmem:[%s219 + $0x18] sm:$0xff]
  %v224 = vld [vmem:[%s219 + $0x20] sm:$0xff]
  %v225 = vld [vmem:[%s219 + $0x28] sm:$0xff]
  %v226 = vld [vmem:[%s219 + $0x30] sm:$0xff]
  %v227 = vld [vmem:[%s219 + $0x38] sm:$0xff]
  %v228 = vld [vmem:[%s219 + $0x40] sm:$0xff]
  %v229 = vld [vmem:[%s219 + $0x48] sm:$0xff]
  %v230 = vld [vmem:[%s219 + $0x50] sm:$0xff]
  %v231 = vld [vmem:[%s219 + $0x58] sm:$0xff]
  %v232 = vpack.c.bf16 %v226, %v220
  %v233 = vpack.c.bf16 %v227, %v221
  %v234 = vpack.c.bf16 %v228, %v222
  %v235 = vpack.c.bf16 %v229, %v223
  %v236 = vpack.c.bf16 %v230, %v224
  %v237 = vpack.c.bf16 %v231, %v225
  %v239 = vperm.slane %v214, 0
  %v240 = vperm.slane %v214, 1
  %v241 = vperm.slane %v214, 2
  %v437 = vunpack.c.l.b16 %v22
  %v438 = vunpack.c.h.b16 %v22
  %v439 = vunpack.c.l.b16 %v23
  %v440 = vunpack.c.l.b16 %v24
  %v441 = vunpack.c.h.b16 %v24
  %v442 = vunpack.c.l.b16 %v25
  %v443 = vunpack.c.l.b16 %v26
  %v444 = vunpack.c.h.b16 %v26
  %v445 = vunpack.c.l.b16 %v27
  %v446 = vunpack.c.l.b16 %v28
  %v447 = vunpack.c.h.b16 %v28
  %v448 = vunpack.c.l.b16 %v29
  %v449 = vunpack.c.l.b16 %v30
  %v450 = vunpack.c.h.b16 %v30
  %v451 = vunpack.c.l.b16 %v31
  %v452 = vunpack.c.l.b16 %v32
  %v453 = vunpack.c.h.b16 %v32
  %v454 = vunpack.c.l.b16 %v33
  %v455 = vunpack.c.l.b16 %v34
  %v456 = vunpack.c.h.b16 %v34
  %v457 = vunpack.c.l.b16 %v35
  %v458 = vunpack.c.l.b16 %v36
  %v459 = vunpack.c.h.b16 %v36
  %v460 = vunpack.c.l.b16 %v37
  %v461 = vunpack.c.l.b16 %v38
  %v462 = vunpack.c.h.b16 %v38
  %v463 = vunpack.c.l.b16 %v39
  %v464 = vunpack.c.l.b16 %v40
  %v465 = vunpack.c.h.b16 %v40
  %v466 = vunpack.c.l.b16 %v41
  %v467 = vunpack.c.l.b16 %v42
  %v468 = vunpack.c.h.b16 %v42
  %v469 = vunpack.c.l.b16 %v43
  %v470 = vunpack.c.l.b16 %v44
  %v471 = vunpack.c.h.b16 %v44
  %v472 = vunpack.c.l.b16 %v45
  %v473 = vunpack.c.l.b16 %v46
  %v474 = vunpack.c.h.b16 %v46
  %v475 = vunpack.c.l.b16 %v47
  %v476 = vunpack.c.l.b16 %v48
  %v477 = vunpack.c.h.b16 %v48
  %v478 = vunpack.c.l.b16 %v49
  %v479 = vunpack.c.l.b16 %v50
  %v480 = vunpack.c.h.b16 %v50
  %v481 = vunpack.c.l.b16 %v51
  %v482 = vunpack.c.l.b16 %v52
  %v483 = vunpack.c.h.b16 %v52
  %v484 = vunpack.c.l.b16 %v53
  %v485 = vunpack.c.l.b16 %v54
  %v486 = vunpack.c.h.b16 %v54
  %v487 = vunpack.c.l.b16 %v55
  %v488 = vunpack.c.l.b16 %v56
  %v489 = vunpack.c.h.b16 %v56
  %v490 = vunpack.c.l.b16 %v57
  %v491 = vunpack.c.l.b16 %v58
  %v492 = vunpack.c.h.b16 %v58
  %v493 = vunpack.c.l.b16 %v59
  %v494 = vunpack.c.l.b16 %v60
  %v495 = vunpack.c.h.b16 %v60
  %v496 = vunpack.c.l.b16 %v61
  %v497 = vunpack.c.l.b16 %v62
  %v498 = vunpack.c.h.b16 %v62
  %v499 = vunpack.c.l.b16 %v63
  %v500 = vunpack.c.l.b16 %v64
  %v501 = vunpack.c.h.b16 %v64
  %v502 = vunpack.c.l.b16 %v65
  %v503 = vunpack.c.l.b16 %v66
  %v504 = vunpack.c.h.b16 %v66
  %v505 = vunpack.c.l.b16 %v67
  %v506 = vunpack.c.l.b16 %v68
  %v507 = vunpack.c.h.b16 %v68
  %v508 = vunpack.c.l.b16 %v69
  %v509 = vunpack.c.l.b16 %v70
  %v510 = vunpack.c.h.b16 %v70
  %v511 = vunpack.c.l.b16 %v71
  %v512 = vunpack.c.l.b16 %v72
  %v513 = vunpack.c.h.b16 %v72
  %v514 = vunpack.c.l.b16 %v73
  %v515 = vunpack.c.l.b16 %v74
  %v516 = vunpack.c.h.b16 %v74
  %v517 = vunpack.c.l.b16 %v75
  %v518 = vunpack.c.l.b16 %v76
  %v519 = vunpack.c.h.b16 %v76
  %v520 = vunpack.c.l.b16 %v77
  %v521 = vunpack.c.l.b16 %v78
  %v522 = vunpack.c.h.b16 %v78
  %v523 = vunpack.c.l.b16 %v79
  %v524 = vunpack.c.l.b16 %v80
  %v525 = vunpack.c.h.b16 %v80
  %v526 = vunpack.c.l.b16 %v81
  %v527 = vunpack.c.l.b16 %v82
  %v528 = vunpack.c.h.b16 %v82
  %v529 = vunpack.c.l.b16 %v83
  %v530 = vunpack.c.l.b16 %v84
  %v531 = vunpack.c.h.b16 %v84
  %v532 = vunpack.c.l.b16 %v85
  %v533 = vunpack.c.l.b16 %v86
  %v534 = vunpack.c.h.b16 %v86
  %v535 = vunpack.c.l.b16 %v87
  %v536 = vunpack.c.l.b16 %v88
  %v537 = vunpack.c.h.b16 %v88
  %v538 = vunpack.c.l.b16 %v89
  %v539 = vunpack.c.l.b16 %v90
  %v540 = vunpack.c.h.b16 %v90
  %v541 = vunpack.c.l.b16 %v91
  %v542 = vunpack.c.l.b16 %v92
  %v543 = vunpack.c.h.b16 %v92
  %v544 = vunpack.c.l.b16 %v93
  %v545 = vunpack.c.l.b16 %v94
  %v546 = vunpack.c.h.b16 %v94
  %v547 = vunpack.c.l.b16 %v95
  %v548 = vunpack.c.l.b16 %v96
  %v549 = vunpack.c.h.b16 %v96
  %v550 = vunpack.c.l.b16 %v97
  %v551 = vunpack.c.l.b16 %v98
  %v552 = vunpack.c.h.b16 %v98
  %v553 = vunpack.c.l.b16 %v99
  %v554 = vunpack.c.l.b16 %v100
  %v555 = vunpack.c.h.b16 %v100
  %v556 = vunpack.c.l.b16 %v101
  %v557 = vunpack.c.l.b16 %v102
  %v558 = vunpack.c.h.b16 %v102
  %v559 = vunpack.c.l.b16 %v103
  %v560 = vunpack.c.l.b16 %v104
  %v561 = vunpack.c.h.b16 %v104
  %v562 = vunpack.c.l.b16 %v105
  %v563 = vunpack.c.l.b16 %v106
  %v564 = vunpack.c.h.b16 %v106
  %v565 = vunpack.c.l.b16 %v107
  %v566 = vunpack.c.l.b16 %v108
  %v567 = vunpack.c.h.b16 %v108
  %v568 = vunpack.c.l.b16 %v109
  %v569 = vunpack.c.l.b16 %v110
  %v570 = vunpack.c.h.b16 %v110
  %v571 = vunpack.c.l.b16 %v111
  %v572 = vunpack.c.l.b16 %v112
  %v573 = vunpack.c.h.b16 %v112
  %v574 = vunpack.c.l.b16 %v113
  %v575 = vunpack.c.l.b16 %v114
  %v576 = vunpack.c.h.b16 %v114
  %v577 = vunpack.c.l.b16 %v115
  %v578 = vunpack.c.l.b16 %v116
  %v579 = vunpack.c.h.b16 %v116
  %v580 = vunpack.c.l.b16 %v117
  %v581 = vunpack.c.l.b16 %v118
  %v582 = vunpack.c.h.b16 %v118
  %v583 = vunpack.c.l.b16 %v119
  %v584 = vunpack.c.l.b16 %v120
  %v585 = vunpack.c.h.b16 %v120
  %v586 = vunpack.c.l.b16 %v121
  %v587 = vunpack.c.l.b16 %v122
  %v588 = vunpack.c.h.b16 %v122
  %v589 = vunpack.c.l.b16 %v123
  %v590 = vunpack.c.l.b16 %v124
  %v591 = vunpack.c.h.b16 %v124
  %v592 = vunpack.c.l.b16 %v125
  %v593 = vunpack.c.l.b16 %v126
  %v594 = vunpack.c.h.b16 %v126
  %v595 = vunpack.c.l.b16 %v127
  %v596 = vunpack.c.l.b16 %v128
  %v597 = vunpack.c.h.b16 %v128
  %v598 = vunpack.c.l.b16 %v129
  %v599 = vunpack.c.l.b16 %v130
  %v600 = vunpack.c.h.b16 %v130
  %v601 = vunpack.c.l.b16 %v131
  %v602 = vunpack.c.l.b16 %v132
  %v603 = vunpack.c.h.b16 %v132
  %v604 = vunpack.c.l.b16 %v133
  %v605 = vunpack.c.l.b16 %v134
  %v606 = vunpack.c.h.b16 %v134
  %v607 = vunpack.c.l.b16 %v135
  %v608 = vunpack.c.l.b16 %v136
  %v609 = vunpack.c.h.b16 %v136
  %v610 = vunpack.c.l.b16 %v137
  %v611 = vunpack.c.l.b16 %v138
  %v612 = vunpack.c.h.b16 %v138
  %v613 = vunpack.c.l.b16 %v139
  %v614 = vunpack.c.l.b16 %v140
  %v615 = vunpack.c.h.b16 %v140
  %v616 = vunpack.c.l.b16 %v141
  %v617 = vunpack.c.l.b16 %v142
  %v618 = vunpack.c.h.b16 %v142
  %v619 = vunpack.c.l.b16 %v143
  %v620 = vunpack.c.l.b16 %v144
  %v621 = vunpack.c.h.b16 %v144
  %v622 = vunpack.c.l.b16 %v145
  %v623 = vunpack.c.l.b16 %v146
  %v624 = vunpack.c.h.b16 %v146
  %v625 = vunpack.c.l.b16 %v147
  %v626 = vunpack.c.l.b16 %v148
  %v627 = vunpack.c.h.b16 %v148
  %v628 = vunpack.c.l.b16 %v149
  %v629 = vunpack.c.l.b16 %v150
  %v630 = vunpack.c.h.b16 %v150
  %v631 = vunpack.c.l.b16 %v151
  %v632 = vunpack.c.l.b16 %v152
  %v633 = vunpack.c.h.b16 %v152
  %v634 = vunpack.c.l.b16 %v153
  %v635 = vunpack.c.l.b16 %v154
  %v636 = vunpack.c.h.b16 %v154
  %v637 = vunpack.c.l.b16 %v155
  %v638 = vunpack.c.l.b16 %v156
  %v639 = vunpack.c.h.b16 %v156
  %v640 = vunpack.c.l.b16 %v157
  %v641 = vunpack.c.l.b16 %v158
  %v642 = vunpack.c.h.b16 %v158
  %v643 = vunpack.c.l.b16 %v159
  %v644 = vunpack.c.l.b16 %v160
  %v645 = vunpack.c.h.b16 %v160
  %v646 = vunpack.c.l.b16 %v161
  %v647 = vunpack.c.l.b16 %v162
  %v648 = vunpack.c.h.b16 %v162
  %v649 = vunpack.c.l.b16 %v163
  %v650 = vunpack.c.l.b16 %v164
  %v651 = vunpack.c.h.b16 %v164
  %v652 = vunpack.c.l.b16 %v165
  %v653 = vunpack.c.l.b16 %v166
  %v654 = vunpack.c.h.b16 %v166
  %v655 = vunpack.c.l.b16 %v167
  %v656 = vunpack.c.l.b16 %v168
  %v657 = vunpack.c.h.b16 %v168
  %v658 = vunpack.c.l.b16 %v169
  %v659 = vunpack.c.l.b16 %v170
  %v660 = vunpack.c.h.b16 %v170
  %v661 = vunpack.c.l.b16 %v171
  %v662 = vunpack.c.l.b16 %v172
  %v663 = vunpack.c.h.b16 %v172
  %v664 = vunpack.c.l.b16 %v173
  %v665 = vunpack.c.l.b16 %v174
  %v666 = vunpack.c.h.b16 %v174
  %v667 = vunpack.c.l.b16 %v175
  %v668 = vunpack.c.l.b16 %v176
  %v669 = vunpack.c.h.b16 %v176
  %v670 = vunpack.c.l.b16 %v177
  %v671 = vunpack.c.l.b16 %v178
  %v672 = vunpack.c.h.b16 %v178
  %v673 = vunpack.c.l.b16 %v179
  %v674 = vunpack.c.l.b16 %v180
  %v675 = vunpack.c.h.b16 %v180
  %v676 = vunpack.c.l.b16 %v181
  %v677 = vunpack.c.l.b16 %v182
  %v678 = vunpack.c.h.b16 %v182
  %v679 = vunpack.c.l.b16 %v183
  %v680 = vunpack.c.l.b16 %v184
  %v681 = vunpack.c.h.b16 %v184
  %v682 = vunpack.c.l.b16 %v185
  %v683 = vunpack.c.l.b16 %v186
  %v684 = vunpack.c.h.b16 %v186
  %v685 = vunpack.c.l.b16 %v187
  %v686 = vunpack.c.l.b16 %v188
  %v687 = vunpack.c.h.b16 %v188
  %v688 = vunpack.c.l.b16 %v189
  %v689 = vunpack.c.l.b16 %v190
  %v690 = vunpack.c.h.b16 %v190
  %v691 = vunpack.c.l.b16 %v191
  %v692 = vunpack.c.l.b16 %v192
  %v693 = vunpack.c.h.b16 %v192
  %v694 = vunpack.c.l.b16 %v193
  %v695 = vunpack.c.l.b16 %v194
  %v696 = vunpack.c.h.b16 %v194
  %v697 = vunpack.c.l.b16 %v195
  %v698 = vunpack.c.l.b16 %v196
  %v699 = vunpack.c.h.b16 %v196
  %v700 = vunpack.c.l.b16 %v197
  %v701 = vunpack.c.l.b16 %v198
  %v702 = vunpack.c.h.b16 %v198
  %v703 = vunpack.c.l.b16 %v199
  %v704 = vunpack.c.l.b16 %v200
  %v705 = vunpack.c.h.b16 %v200
  %v706 = vunpack.c.l.b16 %v201
  %v707 = vunpack.c.l.b16 %v202
  %v708 = vunpack.c.h.b16 %v202
  %v709 = vunpack.c.l.b16 %v203
  %v710 = vunpack.c.l.b16 %v204
  %v711 = vunpack.c.h.b16 %v204
  %v712 = vunpack.c.l.b16 %v205
  %v713 = vunpack.c.l.b16 %v206
  %v714 = vunpack.c.h.b16 %v206
  %v715 = vunpack.c.l.b16 %v207
  %v716 = vunpack.c.l.b16 %v208
  %v717 = vunpack.c.h.b16 %v208
  %v718 = vunpack.c.l.b16 %v209
  %v719 = vunpack.c.l.b16 %v210
  %v720 = vunpack.c.h.b16 %v210
  %v721 = vunpack.c.l.b16 %v211
  %v722 = vunpack.c.l.b16 %v212
  %v723 = vunpack.c.h.b16 %v212
  %v724 = vunpack.c.l.b16 %v213
  %v725 = vpack.c.b16 %v440, %v437
  %v726 = vpack.c.b16 %v441, %v438
  %v727 = vpack.c.b16 %v442, %v439
  %v728 = vpack.c.b16 %v446, %v443
  %v729 = vpack.c.b16 %v447, %v444
  %v730 = vpack.c.b16 %v448, %v445
  %v731 = vpack.c.b16 %v452, %v449
  %v732 = vpack.c.b16 %v453, %v450
  %v733 = vpack.c.b16 %v454, %v451
  %v734 = vpack.c.b16 %v458, %v455
  %v735 = vpack.c.b16 %v459, %v456
  %v736 = vpack.c.b16 %v460, %v457
  %v737 = vpack.c.b16 %v464, %v461
  %v738 = vpack.c.b16 %v465, %v462
  %v739 = vpack.c.b16 %v466, %v463
  %v740 = vpack.c.b16 %v470, %v467
  %v741 = vpack.c.b16 %v471, %v468
  %v742 = vpack.c.b16 %v472, %v469
  %v743 = vpack.c.b16 %v476, %v473
  %v744 = vpack.c.b16 %v477, %v474
  %v745 = vpack.c.b16 %v478, %v475
  %v746 = vpack.c.b16 %v482, %v479
  %v747 = vpack.c.b16 %v483, %v480
  %v748 = vpack.c.b16 %v484, %v481
  %v749 = vpack.c.b16 %v488, %v485
  %v750 = vpack.c.b16 %v489, %v486
  %v751 = vpack.c.b16 %v490, %v487
  %v752 = vpack.c.b16 %v494, %v491
  %v753 = vpack.c.b16 %v495, %v492
  %v754 = vpack.c.b16 %v496, %v493
  %v755 = vpack.c.b16 %v500, %v497
  %v756 = vpack.c.b16 %v501, %v498
  %v757 = vpack.c.b16 %v502, %v499
  %v758 = vpack.c.b16 %v506, %v503
  %v759 = vpack.c.b16 %v507, %v504
  %v760 = vpack.c.b16 %v508, %v505
  %v761 = vpack.c.b16 %v512, %v509
  %v762 = vpack.c.b16 %v513, %v510
  %v763 = vpack.c.b16 %v514, %v511
  %v764 = vpack.c.b16 %v518, %v515
  %v765 = vpack.c.b16 %v519, %v516
  %v766 = vpack.c.b16 %v520, %v517
  %v767 = vpack.c.b16 %v524, %v521
  %v768 = vpack.c.b16 %v525, %v522
  %v769 = vpack.c.b16 %v526, %v523
  %v770 = vpack.c.b16 %v530, %v527
  %v771 = vpack.c.b16 %v531, %v528
  %v772 = vpack.c.b16 %v532, %v529
  %v773 = vpack.c.b16 %v536, %v533
  %v774 = vpack.c.b16 %v537, %v534
  %v775 = vpack.c.b16 %v538, %v535
  %v776 = vpack.c.b16 %v542, %v539
  %v777 = vpack.c.b16 %v543, %v540
  %v778 = vpack.c.b16 %v544, %v541
  %v779 = vpack.c.b16 %v548, %v545
  %v780 = vpack.c.b16 %v549, %v546
  %v781 = vpack.c.b16 %v550, %v547
  %v782 = vpack.c.b16 %v554, %v551
  %v783 = vpack.c.b16 %v555, %v552
  %v784 = vpack.c.b16 %v556, %v553
  %v785 = vpack.c.b16 %v560, %v557
  %v786 = vpack.c.b16 %v561, %v558
  %v787 = vpack.c.b16 %v562, %v559
  %v788 = vpack.c.b16 %v566, %v563
  %v789 = vpack.c.b16 %v567, %v564
  %v790 = vpack.c.b16 %v568, %v565
  %v791 = vpack.c.b16 %v572, %v569
  %v792 = vpack.c.b16 %v573, %v570
  %v793 = vpack.c.b16 %v574, %v571
  %v794 = vpack.c.b16 %v578, %v575
  %v795 = vpack.c.b16 %v579, %v576
  %v796 = vpack.c.b16 %v580, %v577
  %v797 = vpack.c.b16 %v584, %v581
  %v798 = vpack.c.b16 %v585, %v582
  %v799 = vpack.c.b16 %v586, %v583
  %v800 = vpack.c.b16 %v590, %v587
  %v801 = vpack.c.b16 %v591, %v588
  %v802 = vpack.c.b16 %v592, %v589
  %v803 = vpack.c.b16 %v596, %v593
  %v804 = vpack.c.b16 %v597, %v594
  %v805 = vpack.c.b16 %v598, %v595
  %v806 = vpack.c.b16 %v602, %v599
  %v807 = vpack.c.b16 %v603, %v600
  %v808 = vpack.c.b16 %v604, %v601
  %v809 = vpack.c.b16 %v608, %v605
  %v810 = vpack.c.b16 %v609, %v606
  %v811 = vpack.c.b16 %v610, %v607
  %v812 = vpack.c.b16 %v614, %v611
  %v813 = vpack.c.b16 %v615, %v612
  %v814 = vpack.c.b16 %v616, %v613
  %v815 = vpack.c.b16 %v620, %v617
  %v816 = vpack.c.b16 %v621, %v618
  %v817 = vpack.c.b16 %v622, %v619
  %v818 = vpack.c.b16 %v626, %v623
  %v819 = vpack.c.b16 %v627, %v624
  %v820 = vpack.c.b16 %v628, %v625
  %v821 = vpack.c.b16 %v632, %v629
  %v822 = vpack.c.b16 %v633, %v630
  %v823 = vpack.c.b16 %v634, %v631
  %v824 = vpack.c.b16 %v638, %v635
  %v825 = vpack.c.b16 %v639, %v636
  %v826 = vpack.c.b16 %v640, %v637
  %v827 = vpack.c.b16 %v644, %v641
  %v828 = vpack.c.b16 %v645, %v642
  %v829 = vpack.c.b16 %v646, %v643
  %v830 = vpack.c.b16 %v650, %v647
  %v831 = vpack.c.b16 %v651, %v648
  %v832 = vpack.c.b16 %v652, %v649
  %v833 = vpack.c.b16 %v656, %v653
  %v834 = vpack.c.b16 %v657, %v654
  %v835 = vpack.c.b16 %v658, %v655
  %v836 = vpack.c.b16 %v662, %v659
  %v837 = vpack.c.b16 %v663, %v660
  %v838 = vpack.c.b16 %v664, %v661
  %v839 = vpack.c.b16 %v668, %v665
  %v840 = vpack.c.b16 %v669, %v666
  %v841 = vpack.c.b16 %v670, %v667
  %v842 = vpack.c.b16 %v674, %v671
  %v843 = vpack.c.b16 %v675, %v672
  %v844 = vpack.c.b16 %v676, %v673
  %v845 = vpack.c.b16 %v680, %v677
  %v846 = vpack.c.b16 %v681, %v678
  %v847 = vpack.c.b16 %v682, %v679
  %v848 = vpack.c.b16 %v686, %v683
  %v849 = vpack.c.b16 %v687, %v684
  %v850 = vpack.c.b16 %v688, %v685
  %v851 = vpack.c.b16 %v692, %v689
  %v852 = vpack.c.b16 %v693, %v690
  %v853 = vpack.c.b16 %v694, %v691
  %v854 = vpack.c.b16 %v698, %v695
  %v855 = vpack.c.b16 %v699, %v696
  %v856 = vpack.c.b16 %v700, %v697
  %v857 = vpack.c.b16 %v704, %v701
  %v858 = vpack.c.b16 %v705, %v702
  %v859 = vpack.c.b16 %v706, %v703
  %v860 = vpack.c.b16 %v710, %v707
  %v861 = vpack.c.b16 %v711, %v708
  %v862 = vpack.c.b16 %v712, %v709
  %v863 = vpack.c.b16 %v716, %v713
  %v864 = vpack.c.b16 %v717, %v714
  %v865 = vpack.c.b16 %v718, %v715
  %v866 = vpack.c.b16 %v722, %v719
  %v867 = vpack.c.b16 %v723, %v720
  %v868 = vpack.c.b16 %v724, %v721
  %1013 = vmatpush.bf16.msra.mxu0 %v746
  %1014 = vmatpush.bf16.msra.mxu0 %v743
  %1015 = vmatpush.bf16.msra.mxu0 %v740
  %1016 = vmatpush.bf16.msra.mxu0 %v737
  %1017 = vmatpush.bf16.msra.mxu0 %v734
  %1018 = vmatpush.bf16.msra.mxu0 %v731
  %1019 = vmatpush.bf16.msra.mxu0 %v728
  %1020 = vmatpush.bf16.msra.mxu0 %v725
  %1021 = vmatmul.bf16.gmra.mxu0 %v232
  %v1022 = vpop.f32.mrf.mxu0
  %v1023 = vadd.f32 %v239, %v1022
  %v1024 = vpop.f32.mrf.mxu0
  %v1025 = vadd.f32 %v239, %v1024
  %1026 = vdwg.mxu0
  %1027 = vmatpush.bf16.msra.mxu0 %v770
  %1028 = vmatpush.bf16.msra.mxu0 %v767
  %1029 = vmatpush.bf16.msra.mxu0 %v764
  %1030 = vmatpush.bf16.msra.mxu0 %v761
  %1031 = vmatpush.bf16.msra.mxu0 %v758
  %1032 = vmatpush.bf16.msra.mxu0 %v755
  %1033 = vmatpush.bf16.msra.mxu0 %v752
  %1034 = vmatpush.bf16.msra.mxu0 %v749
  %1035 = vmatmul.bf16.gmra.mxu0 %v233
  %v1036 = vpop.f32.mrf.mxu0
  %v1037 = vadd.f32 %v1023, %v1036
  %v1038 = vpop.f32.mrf.mxu0
  %v1039 = vadd.f32 %v1025, %v1038
  %1040 = vdwg.mxu0
  %1041 = vmatpush.bf16.msra.mxu0 %v794
  %1042 = vmatpush.bf16.msra.mxu0 %v791
  %1043 = vmatpush.bf16.msra.mxu0 %v788
  %1044 = vmatpush.bf16.msra.mxu0 %v785
  %1045 = vmatpush.bf16.msra.mxu0 %v782
  %1046 = vmatpush.bf16.msra.mxu0 %v779
  %1047 = vmatpush.bf16.msra.mxu0 %v776
  %1048 = vmatpush.bf16.msra.mxu0 %v773
  %1049 = vmatmul.bf16.gmra.mxu0 %v234
  %v1050 = vpop.f32.mrf.mxu0
  %v1051 = vadd.f32 %v1037, %v1050
  %v1052 = vpop.f32.mrf.mxu0
  %v1053 = vadd.f32 %v1039, %v1052
  %1054 = vdwg.mxu0
  %1055 = vmatpush.bf16.msra.mxu0 %v818
  %1056 = vmatpush.bf16.msra.mxu0 %v815
  %1057 = vmatpush.bf16.msra.mxu0 %v812
  %1058 = vmatpush.bf16.msra.mxu0 %v809
  %1059 = vmatpush.bf16.msra.mxu0 %v806
  %1060 = vmatpush.bf16.msra.mxu0 %v803
  %1061 = vmatpush.bf16.msra.mxu0 %v800
  %1062 = vmatpush.bf16.msra.mxu0 %v797
  %1063 = vmatmul.bf16.gmra.mxu0 %v235
  %v1064 = vpop.f32.mrf.mxu0
  %v1065 = vadd.f32 %v1051, %v1064
  %v1066 = vpop.f32.mrf.mxu0
  %v1067 = vadd.f32 %v1053, %v1066
  %1068 = vdwg.mxu0
  %1069 = vmatpush.bf16.msra.mxu0 %v842
  %1070 = vmatpush.bf16.msra.mxu0 %v839
  %1071 = vmatpush.bf16.msra.mxu0 %v836
  %1072 = vmatpush.bf16.msra.mxu0 %v833
  %1073 = vmatpush.bf16.msra.mxu0 %v830
  %1074 = vmatpush.bf16.msra.mxu0 %v827
  %1075 = vmatpush.bf16.msra.mxu0 %v824
  %1076 = vmatpush.bf16.msra.mxu0 %v821
  %1077 = vmatmul.bf16.gmra.mxu0 %v236
  %v1078 = vpop.f32.mrf.mxu0
  %v1079 = vadd.f32 %v1065, %v1078
  %v1080 = vpop.f32.mrf.mxu0
  %v1081 = vadd.f32 %v1067, %v1080
  %1082 = vdwg.mxu0
  %1083 = vmatpush.bf16.msra.mxu0 %v866
  %1084 = vmatpush.bf16.msra.mxu0 %v863
  %1085 = vmatpush.bf16.msra.mxu0 %v860
  %1086 = vmatpush.bf16.msra.mxu0 %v857
  %1087 = vmatpush.bf16.msra.mxu0 %v854
  %1088 = vmatpush.bf16.msra.mxu0 %v851
  %1089 = vmatpush.bf16.msra.mxu0 %v848
  %1090 = vmatpush.bf16.msra.mxu0 %v845
  %1091 = vmatmul.bf16.gmra.mxu0 %v237
  %v1092 = vpop.f32.mrf.mxu0
  %v1093 = vadd.f32 %v1079, %v1092
  %v1094 = vpop.f32.mrf.mxu0
  %v1095 = vadd.f32 %v1081, %v1094
  %1096 = vdwg.mxu0
  %1097 = vmatpush.bf16.msra.mxu0 %v747
  %1098 = vmatpush.bf16.msra.mxu0 %v744
  %1099 = vmatpush.bf16.msra.mxu0 %v741
  %1100 = vmatpush.bf16.msra.mxu0 %v738
  %1101 = vmatpush.bf16.msra.mxu0 %v735
  %1102 = vmatpush.bf16.msra.mxu0 %v732
  %1103 = vmatpush.bf16.msra.mxu0 %v729
  %1104 = vmatpush.bf16.msra.mxu0 %v726
  %1105 = vmatmul.bf16.gmra.mxu0 %v232
  %v1106 = vpop.f32.mrf.mxu0
  %v1107 = vadd.f32 %v240, %v1106
  %v1108 = vpop.f32.mrf.mxu0
  %v1109 = vadd.f32 %v240, %v1108
  %1110 = vdwg.mxu0
  %1111 = vmatpush.bf16.msra.mxu0 %v771
  %1112 = vmatpush.bf16.msra.mxu0 %v768
  %1113 = vmatpush.bf16.msra.mxu0 %v765
  %1114 = vmatpush.bf16.msra.mxu0 %v762
  %1115 = vmatpush.bf16.msra.mxu0 %v759
  %1116 = vmatpush.bf16.msra.mxu0 %v756
  %1117 = vmatpush.bf16.msra.mxu0 %v753
  %1118 = vmatpush.bf16.msra.mxu0 %v750
  %1119 = vmatmul.bf16.gmra.mxu0 %v233
  %v1120 = vpop.f32.mrf.mxu0
  %v1121 = vadd.f32 %v1107, %v1120
  %v1122 = vpop.f32.mrf.mxu0
  %v1123 = vadd.f32 %v1109, %v1122
  %1124 = vdwg.mxu0
  %1125 = vmatpush.bf16.msra.mxu0 %v795
  %1126 = vmatpush.bf16.msra.mxu0 %v792
  %1127 = vmatpush.bf16.msra.mxu0 %v789
  %1128 = vmatpush.bf16.msra.mxu0 %v786
  %1129 = vmatpush.bf16.msra.mxu0 %v783
  %1130 = vmatpush.bf16.msra.mxu0 %v780
  %1131 = vmatpush.bf16.msra.mxu0 %v777
  %1132 = vmatpush.bf16.msra.mxu0 %v774
  %1133 = vmatmul.bf16.gmra.mxu0 %v234
  %v1134 = vpop.f32.mrf.mxu0
  %v1135 = vadd.f32 %v1121, %v1134
  %v1136 = vpop.f32.mrf.mxu0
  %v1137 = vadd.f32 %v1123, %v1136
  %1138 = vdwg.mxu0
  %1139 = vmatpush.bf16.msra.mxu0 %v819
  %1140 = vmatpush.bf16.msra.mxu0 %v816
  %1141 = vmatpush.bf16.msra.mxu0 %v813
  %1142 = vmatpush.bf16.msra.mxu0 %v810
  %1143 = vmatpush.bf16.msra.mxu0 %v807
  %1144 = vmatpush.bf16.msra.mxu0 %v804
  %1145 = vmatpush.bf16.msra.mxu0 %v801
  %1146 = vmatpush.bf16.msra.mxu0 %v798
  %1147 = vmatmul.bf16.gmra.mxu0 %v235
  %v1148 = vpop.f32.mrf.mxu0
  %v1149 = vadd.f32 %v1135, %v1148
  %v1150 = vpop.f32.mrf.mxu0
  %v1151 = vadd.f32 %v1137, %v1150
  %1152 = vdwg.mxu0
  %1153 = vmatpush.bf16.msra.mxu0 %v843
  %1154 = vmatpush.bf16.msra.mxu0 %v840
  %1155 = vmatpush.bf16.msra.mxu0 %v837
  %1156 = vmatpush.bf16.msra.mxu0 %v834
  %1157 = vmatpush.bf16.msra.mxu0 %v831
  %1158 = vmatpush.bf16.msra.mxu0 %v828
  %1159 = vmatpush.bf16.msra.mxu0 %v825
  %1160 = vmatpush.bf16.msra.mxu0 %v822
  %1161 = vmatmul.bf16.gmra.mxu0 %v236
  %v1162 = vpop.f32.mrf.mxu0
  %v1163 = vadd.f32 %v1149, %v1162
  %v1164 = vpop.f32.mrf.mxu0
  %v1165 = vadd.f32 %v1151, %v1164
  %1166 = vdwg.mxu0
  %1167 = vmatpush.bf16.msra.mxu0 %v867
  %1168 = vmatpush.bf16.msra.mxu0 %v864
  %1169 = vmatpush.bf16.msra.mxu0 %v861
  %1170 = vmatpush.bf16.msra.mxu0 %v858
  %1171 = vmatpush.bf16.msra.mxu0 %v855
  %1172 = vmatpush.bf16.msra.mxu0 %v852
  %1173 = vmatpush.bf16.msra.mxu0 %v849
  %1174 = vmatpush.bf16.msra.mxu0 %v846
  %1175 = vmatmul.bf16.gmra.mxu0 %v237
  %v1176 = vpop.f32.mrf.mxu0
  %v1177 = vadd.f32 %v1163, %v1176
  %v1178 = vpop.f32.mrf.mxu0
  %v1179 = vadd.f32 %v1165, %v1178
  %1180 = vdwg.mxu0
  %1181 = vmatpush.bf16.msra.mxu0 %v748
  %1182 = vmatpush.bf16.msra.mxu0 %v745
  %1183 = vmatpush.bf16.msra.mxu0 %v742
  %1184 = vmatpush.bf16.msra.mxu0 %v739
  %1185 = vmatpush.bf16.msra.mxu0 %v736
  %1186 = vmatpush.bf16.msra.mxu0 %v733
  %1187 = vmatpush.bf16.msra.mxu0 %v730
  %1188 = vmatpush.bf16.msra.mxu0 %v727
  %1189 = vmatmul.bf16.gmra.mxu0 %v232
  %v1190 = vpop.f32.mrf.mxu0
  %v1191 = vadd.f32 %v241, %v1190
  %v1192 = vpop.f32.mrf.mxu0
  %v1193 = vadd.f32 %v241, %v1192
  %1194 = vdwg.mxu0
  %1195 = vmatpush.bf16.msra.mxu0 %v772
  %1196 = vmatpush.bf16.msra.mxu0 %v769
  %1197 = vmatpush.bf16.msra.mxu0 %v766
  %1198 = vmatpush.bf16.msra.mxu0 %v763
  %1199 = vmatpush.bf16.msra.mxu0 %v760
  %1200 = vmatpush.bf16.msra.mxu0 %v757
  %1201 = vmatpush.bf16.msra.mxu0 %v754
  %1202 = vmatpush.bf16.msra.mxu0 %v751
  %1203 = vmatmul.bf16.gmra.mxu0 %v233
  %v1204 = vpop.f32.mrf.mxu0
  %v1205 = vadd.f32 %v1191, %v1204
  %v1206 = vpop.f32.mrf.mxu0
  %v1207 = vadd.f32 %v1193, %v1206
  %1208 = vdwg.mxu0
  %1209 = vmatpush.bf16.msra.mxu0 %v796
  %1210 = vmatpush.bf16.msra.mxu0 %v793
  %1211 = vmatpush.bf16.msra.mxu0 %v790
  %1212 = vmatpush.bf16.msra.mxu0 %v787
  %1213 = vmatpush.bf16.msra.mxu0 %v784
  %1214 = vmatpush.bf16.msra.mxu0 %v781
  %1215 = vmatpush.bf16.msra.mxu0 %v778
  %1216 = vmatpush.bf16.msra.mxu0 %v775
  %1217 = vmatmul.bf16.gmra.mxu0 %v234
  %v1218 = vpop.f32.mrf.mxu0
  %v1219 = vadd.f32 %v1205, %v1218
  %v1220 = vpop.f32.mrf.mxu0
  %v1221 = vadd.f32 %v1207, %v1220
  %1222 = vdwg.mxu0
  %1223 = vmatpush.bf16.msra.mxu0 %v820
  %1224 = vmatpush.bf16.msra.mxu0 %v817
  %1225 = vmatpush.bf16.msra.mxu0 %v814
  %1226 = vmatpush.bf16.msra.mxu0 %v811
  %1227 = vmatpush.bf16.msra.mxu0 %v808
  %1228 = vmatpush.bf16.msra.mxu0 %v805
  %1229 = vmatpush.bf16.msra.mxu0 %v802
  %1230 = vmatpush.bf16.msra.mxu0 %v799
  %1231 = vmatmul.bf16.gmra.mxu0 %v235
  %v1232 = vpop.f32.mrf.mxu0
  %v1233 = vadd.f32 %v1219, %v1232
  %v1234 = vpop.f32.mrf.mxu0
  %v1235 = vadd.f32 %v1221, %v1234
  %1236 = vdwg.mxu0
  %1237 = vmatpush.bf16.msra.mxu0 %v844
  %1238 = vmatpush.bf16.msra.mxu0 %v841
  %1239 = vmatpush.bf16.msra.mxu0 %v838
  %1240 = vmatpush.bf16.msra.mxu0 %v835
  %1241 = vmatpush.bf16.msra.mxu0 %v832
  %1242 = vmatpush.bf16.msra.mxu0 %v829
  %1243 = vmatpush.bf16.msra.mxu0 %v826
  %1244 = vmatpush.bf16.msra.mxu0 %v823
  %1245 = vmatmul.bf16.gmra.mxu0 %v236
  %v1246 = vpop.f32.mrf.mxu0
  %v1247 = vadd.f32 %v1233, %v1246
  %v1248 = vpop.f32.mrf.mxu0
  %v1249 = vadd.f32 %v1235, %v1248
  %1250 = vdwg.mxu0
  %1251 = vmatpush.bf16.msra.mxu0 %v868
  %1252 = vmatpush.bf16.msra.mxu0 %v865
  %1253 = vmatpush.bf16.msra.mxu0 %v862
  %1254 = vmatpush.bf16.msra.mxu0 %v859
  %1255 = vmatpush.bf16.msra.mxu0 %v856
  %1256 = vmatpush.bf16.msra.mxu0 %v853
  %1257 = vmatpush.bf16.msra.mxu0 %v850
  %1258 = vmatpush.bf16.msra.mxu0 %v847
  %1259 = vmatmul.bf16.gmra.mxu0 %v237
  %v1260 = vpop.f32.mrf.mxu0
  %v1261 = vadd.f32 %v1247, %v1260
  %v1262 = vpop.f32.mrf.mxu0
  %v1263 = vadd.f32 %v1249, %v1262
  %1264 = vdwg.mxu0
  %v1265 = vmax.f32 %v1093, 0.0
  %v1266 = vmax.f32 %v1177, 0.0
  %v1267 = vmax.f32 %v1261, 0.0
  %v1268 = vmax.f32 %v1095, 0.0
  %v1269 = vmax.f32 %v1179, 0.0
  %v1270 = vmax.f32 %v1263, 0.0
  %v1272 = vperm.slane %v215, 0
  %v1273 = vperm.slane %v215, 1
  %v1274 = vperm.slane %v215, 2
  %v1278 = vmul.f32 %v1265, %v1272
  %v1279 = vmul.f32 %v1266, %v1273
  %v1280 = vmul.f32 %v1267, %v1274
  %v1281 = vmul.f32 %v1268, %v1272
  %v1282 = vmul.f32 %v1269, %v1273
  %v1283 = vmul.f32 %v1270, %v1274
  %v1284 = vadd.f32 %v1278, %v1279
  %v1285 = vadd.f32 %v1284, %v1280
  %1286 = vadd.xlane.f32.xlu0 %v1285
  %v1287 = vpop.xlane.xlu0 %1286
  %v1288 = vadd.f32 %v1281, %v1282
  %v1289 = vadd.f32 %v1288, %v1283
  %1290 = vadd.xlane.f32.xlu0 %v1289
  %v1291 = vpop.xlane.xlu0 %1290
  %v1293 = vperm.slane %v216, 0
  %v1295 = vadd.f32 %v1287, %v1293
  %v1296 = vadd.f32 %v1291, %v1293
  %vm1297 = vcmask 7168
  %1298 = vst.msk [vmem:[%s5] sm:$0xff] %vm1297, %v1295
  %1299 = vst.msk [vmem:[%s5 + $0x8] sm:$0xff] %vm1297, %v1296
  // Predicated region
  $region22: #{universal_fake_detect_v2.1} parent=0 // pred_check
    _
  $region23: #{universal_fake_detect_v2.1} parent=0 // pred_check_branch
    %1301 = sbr.rel (0) target = $region25
  $region24: #{universal_fake_detect_v2.1} parent=0 // pred_region
    _
  $region25: #{universal_fake_detect_v2.1} parent=0 // pred_fallthru
    _
  // Predicated region
  $region26: #{universal_fake_detect_v2.1} parent=0 // pred_check
    _
  $region27: #{universal_fake_detect_v2.1} parent=0 // pred_check_branch
    %1303 = sbr.rel (0) target = $region29
  $region28: #{universal_fake_detect_v2.1} parent=0 // pred_region
    _
  $region29: #{universal_fake_detect_v2.1} parent=0 // pred_fallthru
    _

</llo_original>
